<compile_context>
chip_gen: v7x
topology: tpu7x:2x2x1
jax: 0.10.0
libtpu: 0.0.40
codegen_flags: <defaults>
</compile_context>

<pallas_src>
import jax
import jax.numpy as jnp
from jax.experimental import pallas as pl
from jax.experimental.pallas import tpu as pltpu

D_IN = 979      # fc1 input features
D_HID = 50      # fc1 output / fc3 input features
D_OUT = 1       # fc3 output features
D_HID_P = 64    # hidden padded to a sublane-friendly size (zero padding is inert)

DEFAULT_TILE_B = 1024   # batch tile: ~3.8 MiB of f32 x per buffer


def _round_up(x, m):
    return (x + m - 1) // m * m


def mlp_kernel(x_ref, w1_ref, b1_ref, w3_ref, b3_ref, o_ref):
    """sigmoid(relu(x @ w1 + b1) . w3 + b3) for one batch tile."""
    x = x_ref[...]                                                   # (TILE_B, 979) f32
    # fc1 on the MXU, f32 accumulation.
    h = jnp.dot(x, w1_ref[...], preferred_element_type=jnp.float32)  # (TILE_B, 64)
    h = jnp.maximum(h + b1_ref[...], 0.0)                            # bias + ReLU (VPU)
    # fc3 (50 -> 1) as elementwise multiply + lane reduction (VPU + XLU); avoids
    # an MXU matmul that would produce 127 dead output columns.
    o = jnp.sum(h * w3_ref[...], axis=-1, keepdims=True) + b3_ref[...]   # (TILE_B, 1)
    o_ref[...] = jax.nn.sigmoid(o).astype(o_ref.dtype)


@jax.jit
def neural_net_pairs_forward(x, w1, b1, w3, b3):
    """Forward pass of NeuralNetPairs.

    x:  (N, 979) float32
    w1: (979, 50), b1: (50,)   -- fc1 (stored transposed vs. torch's (out,in))
    w3: (50, 1),  b3: (1,)     -- fc3
    returns: (N, 1) float32
    """
    n = x.shape[0]
    tile_b = min(DEFAULT_TILE_B, _round_up(max(n, 1), 8))
    grid = (pl.cdiv(n, tile_b),)

    x = x.astype(jnp.float32)

    # Pad only the tiny weight/bias arrays (zero padding is mathematically inert).
    w1_p = jnp.zeros((D_IN, D_HID_P), jnp.float32).at[:, :D_HID].set(
        w1.astype(jnp.float32))
    b1_p = jnp.zeros((1, D_HID_P), jnp.float32).at[0, :D_HID].set(
        b1.astype(jnp.float32))
    w3_p = jnp.zeros((1, D_HID_P), jnp.float32).at[0, :D_HID].set(
        w3.astype(jnp.float32).reshape(D_HID))
    b3_p = b3.astype(jnp.float32).reshape(1, 1)

    cost = pl.CostEstimate(
        flops=2 * n * D_IN * D_HID + 4 * n * D_HID,
        transcendentals=n,                      # one sigmoid per row
        bytes_accessed=n * D_IN * 4             # x read (dominant)
        + (D_IN * D_HID_P + 2 * D_HID_P + 1) * 4  # weights / biases
        + n * D_OUT * 4,                        # output write
    )

    out = pl.pallas_call(
        mlp_kernel,
        out_shape=jax.ShapeDtypeStruct((n, D_OUT), jnp.float32),
        grid=grid,
        in_specs=[
            pl.BlockSpec((tile_b, D_IN), lambda i: (i, 0)),    # x: tiled over batch
            pl.BlockSpec((D_IN, D_HID_P), lambda i: (0, 0)),   # w1: VMEM-resident
            pl.BlockSpec((1, D_HID_P), lambda i: (0, 0)),      # b1
            pl.BlockSpec((1, D_HID_P), lambda i: (0, 0)),      # w3 (as a row)
            pl.BlockSpec((1, 1), lambda i: (0, 0)),            # b3
        ],
        out_specs=pl.BlockSpec((tile_b, D_OUT), lambda i: (i, 0)),
        compiler_params=pltpu.CompilerParams(
            dimension_semantics=("parallel",),   # batch tiles are independent
        ),
        cost_estimate=cost,
    )(x, w1_p, b1_p, w3_p, b3_p)

    return out


def init_params(key):
    """Deterministic init mimicking torch.nn.Linear defaults (U(-1/sqrt(fan_in), +))."""
    k1, k2, k3, k4 = jax.random.split(key, 4)
    bound1 = 1.0 / jnp.sqrt(jnp.float32(D_IN))
    bound3 = 1.0 / jnp.sqrt(jnp.float32(D_HID))
    w1 = jax.random.uniform(k1, (D_IN, D_HID), jnp.float32, -bound1, bound1)
    b1 = jax.random.uniform(k2, (D_HID,), jnp.float32, -bound1, bound1)
    w3 = jax.random.uniform(k3, (D_HID, D_OUT), jnp.float32, -bound3, bound3)
    b3 = jax.random.uniform(k4, (D_OUT,), jnp.float32, -bound3, bound3)
    return w1, b1, w3, b3


if __name__ == "__main__":
    key = jax.random.PRNGKey(0)
    k_x, k_p = jax.random.split(key)

    N = 4  # small batch (forward spec: (N, 979) -> (N, 1))
    x = jax.random.normal(k_x, (N, D_IN), jnp.float32)
    w1, b1, w3, b3 = init_params(k_p)

    out = neural_net_pairs_forward(x, w1, b1, w3, b3)
    out = jax.block_until_ready(out)

    # Pure-JAX reference check (same math, no Pallas).
    ref = jax.nn.sigmoid(jnp.maximum(x @ w1 + b1, 0.0) @ w3 + b3)
    assert out.shape == (N, 1), out.shape
    assert jnp.allclose(out, ref, atol=1e-5, rtol=1e-5), (out, ref)

    print("KERNEL_OK")
</pallas_src>

<mosaic_0001>
module attributes {stable_mosaic.version = 11 : i64} {
  func.func @mlp_kernel(%arg0: i32, %arg1: memref<8x979xf32, #tpu.memory_space<vmem>>, %arg2: memref<979x64xf32, #tpu.memory_space<vmem>>, %arg3: memref<1x64xf32, #tpu.memory_space<vmem>>, %arg4: memref<1x64xf32, #tpu.memory_space<vmem>>, %arg5: memref<1x1xf32, #tpu.memory_space<vmem>>, %arg6: memref<8x1xf32, #tpu.memory_space<vmem>>) attributes {dimension_semantics = [#tpu.dimension_semantics<parallel>], iteration_bounds = array<i64: 1>, scalar_prefetch = 0 : i64, scratch_operands = 0 : i64, tpu.core_type = #tpu.core_type<tc>, window_params = [{transform_indices = @transform_0, window_bounds = array<i64: 8, 979>}, {pipeline_mode = #tpu.pipeline_mode<synchronous>, transform_indices = @transform_1, window_bounds = array<i64: 979, 64>}, {pipeline_mode = #tpu.pipeline_mode<synchronous>, transform_indices = @transform_2, window_bounds = array<i64: 1, 64>}, {pipeline_mode = #tpu.pipeline_mode<synchronous>, transform_indices = @transform_3, window_bounds = array<i64: 1, 64>}, {pipeline_mode = #tpu.pipeline_mode<synchronous>, transform_indices = @transform_4, window_bounds = array<i64: 1, 1>}, {transform_indices = @transform_5, window_bounds = array<i64: 8, 1>}]} {
    %c0 = arith.constant 0 : index
    %c0_0 = arith.constant 0 : index
    %0 = vector.load %arg1[%c0, %c0_0] : memref<8x979xf32, #tpu.memory_space<vmem>>, vector<8x979xf32>
    %c0_1 = arith.constant 0 : index
    %c0_2 = arith.constant 0 : index
    %1 = vector.load %arg2[%c0_1, %c0_2] : memref<979x64xf32, #tpu.memory_space<vmem>>, vector<979x64xf32>
    %cst = arith.constant dense<0.000000e+00> : vector<8x64xf32>
    %2 = tpu.matmul %0, %1, %cst {dimension_numbers = #tpu.dot_dimension_numbers<[1], [0], [0], [1], [0, 0, 1, 1], [], []>} : vector<8x979xf32>, vector<979x64xf32>, vector<8x64xf32> -> vector<8x64xf32>
    %c0_3 = arith.constant 0 : index
    %c0_4 = arith.constant 0 : index
    %3 = vector.load %arg3[%c0_3, %c0_4] : memref<1x64xf32, #tpu.memory_space<vmem>>, vector<1x64xf32>
    %4 = vector.broadcast %3 : vector<1x64xf32> to vector<8x64xf32>
    %5 = arith.addf %2, %4 : vector<8x64xf32>
    %cst_5 = arith.constant 0.000000e+00 : f32
    %6 = vector.broadcast %cst_5 : f32 to vector<8x64xf32>
    %7 = arith.maximumf %5, %6 : vector<8x64xf32>
    %c0_6 = arith.constant 0 : index
    %c0_7 = arith.constant 0 : index
    %8 = vector.load %arg4[%c0_6, %c0_7] : memref<1x64xf32, #tpu.memory_space<vmem>>, vector<1x64xf32>
    %9 = vector.broadcast %8 : vector<1x64xf32> to vector<8x64xf32>
    %10 = arith.mulf %7, %9 : vector<8x64xf32>
    %cst_8 = arith.constant dense<0.000000e+00> : vector<8xf32>
    %11 = vector.multi_reduction <add>, %10, %cst_8 [1] : vector<8x64xf32> to vector<8xf32>
    %12 = vector.shape_cast %11 : vector<8xf32> to vector<8x1xf32>
    %c0_9 = arith.constant 0 : index
    %c0_10 = arith.constant 0 : index
    %13 = vector.load %arg5[%c0_9, %c0_10] : memref<1x1xf32, #tpu.memory_space<vmem>>, vector<1x1xf32>
    %14 = vector.broadcast %13 : vector<1x1xf32> to vector<8x1xf32>
    %15 = arith.addf %12, %14 : vector<8x1xf32>
    %16 = arith.negf %15 : vector<8x1xf32>
    %17 = math.exp %16 : vector<8x1xf32>
    %cst_11 = arith.constant 1.000000e+00 : f32
    %18 = vector.broadcast %cst_11 : f32 to vector<8x1xf32>
    %19 = arith.addf %18, %17 : vector<8x1xf32>
    %20 = arith.divf %18, %19 : vector<8x1xf32>
    %c0_12 = arith.constant 0 : index
    %c0_13 = arith.constant 0 : index
    %21 = vector.load %arg6[%c0_12, %c0_13] : memref<8x1xf32, #tpu.memory_space<vmem>>, vector<8x1xf32>
    tpu.vector_store %arg6[%c0_12, %c0_13], %20 {strides = array<i32>} : memref<8x1xf32, #tpu.memory_space<vmem>>, vector<8x1xf32>,
    return
  }
  func.func @transform_0(%arg0: i32) -> (i32, i32) {
    %c0_i32 = arith.constant 0 : i32
    %c0_i32_0 = arith.constant 0 : i32
    return %arg0, %c0_i32 : i32, i32
  }
  func.func @transform_1(%arg0: i32) -> (i32, i32) {
    %c0_i32 = arith.constant 0 : i32
    %c0_i32_0 = arith.constant 0 : i32
    %c0_i32_1 = arith.constant 0 : i32
    return %c0_i32, %c0_i32_0 : i32, i32
  }
  func.func @transform_2(%arg0: i32) -> (i32, i32) {
    %c0_i32 = arith.constant 0 : i32
    %c0_i32_0 = arith.constant 0 : i32
    %c0_i32_1 = arith.constant 0 : i32
    return %c0_i32, %c0_i32_0 : i32, i32
  }
  func.func @transform_3(%arg0: i32) -> (i32, i32) {
    %c0_i32 = arith.constant 0 : i32
    %c0_i32_0 = arith.constant 0 : i32
    %c0_i32_1 = arith.constant 0 : i32
    return %c0_i32, %c0_i32_0 : i32, i32
  }
  func.func @transform_4(%arg0: i32) -> (i32, i32) {
    %c0_i32 = arith.constant 0 : i32
    %c0_i32_0 = arith.constant 0 : i32
    %c0_i32_1 = arith.constant 0 : i32
    return %c0_i32, %c0_i32_0 : i32, i32
  }
  func.func @transform_5(%arg0: i32) -> (i32, i32) {
    %c0_i32 = arith.constant 0 : i32
    %c0_i32_0 = arith.constant 0 : i32
    return %arg0, %c0_i32 : i32, i32
  }
}

</mosaic_0001>

<llo_original>
// kernel: neural_net_pairs_forward.1
$region0: #{neural_net_pairs_forward.1}
  #allocation0 [shape = 'u32[]', space=smem, size = 0x4, offset = 0x4, fixed_abs, tag = 'smem constant byte address 0x4 - core index']
  #allocation1 [shape = 'u32[144,128]{1,0:T(1,128)}', space=vmem, size = 0x12000, scoped, tag = 'internal scratch']
  #allocation2 [shape = 'f32[1,1]{1,0:T(1,128)S(1)}', space=vmem, size = 0x200, scoped, tag = 'scoped memory for neural_net_pairs_forward.1']
  %s0 = inlined_call_operand.vmem [shape: f32[4,979], index: 0, kind: input, shape index: {}]
  %s1 = inlined_call_operand.vmem [shape: f32[979,64], index: 1, kind: input, shape index: {}]
  %s2 = inlined_call_operand.vmem [shape: f32[1,64], index: 2, kind: input, shape index: {}]
  %s3 = inlined_call_operand.vmem [shape: f32[1,64], index: 3, kind: input, shape index: {}]
  %s4 = inlined_call_operand.<no memory space> [shape: f32[1,1], index: 4, kind: input, shape index: {}]
  %s5 = inlined_call_operand.vmem [shape: f32[4,1], index: 5, kind: output, shape index: {}]
  %s6 = sld [smem:[#allocation0]]
  $region60: #{neural_net_pairs_forward.1} parent=0
    _
  %s8 = ssub.s32 1, %s6
  %s9 = scalar_select 0, %s8, %s6
  %v10 = vstv %s4
  %11 = vst [vmem:[#allocation2] sm:$0x1] %v10
  $region1: #{neural_net_pairs_forward.1} parent=0
    #allocation3 [shape = 'u8[4096]{0}', space=vmem, size = 0x1000, scoped, tag = 'output window, operand 0, single buffered']
    // Predicated region
    $region2: #{neural_net_pairs_forward.1} parent=1 // pred_check
      _
    $region3: #{neural_net_pairs_forward.1} parent=1 // pred_check_branch
      %13 = sbr.rel (0) target = $region5
    $region4: #{neural_net_pairs_forward.1} parent=1 // pred_region
      _
    $region5: #{neural_net_pairs_forward.1} parent=1 // pred_fallthru
      _
    // Predicated region
    $region6: #{neural_net_pairs_forward.1} parent=1 // pred_check
      _
    $region7: #{neural_net_pairs_forward.1} parent=1 // pred_check_branch
      %15 = sbr.rel (0) target = $region9
    $region8: #{neural_net_pairs_forward.1} parent=1 // pred_region
      _
    $region9: #{neural_net_pairs_forward.1} parent=1 // pred_fallthru
      _
    // Predicated region
    $region10: #{neural_net_pairs_forward.1} parent=1 // pred_check
      _
    $region11: #{neural_net_pairs_forward.1} parent=1 // pred_check_branch
      %17 = sbr.rel (0) target = $region13
    $region12: #{neural_net_pairs_forward.1} parent=1 // pred_region
      _
    $region13: #{neural_net_pairs_forward.1} parent=1 // pred_fallthru
      _
    // Predicated region
    $region14: #{neural_net_pairs_forward.1} parent=1 // pred_check
      _
    $region15: #{neural_net_pairs_forward.1} parent=1 // pred_check_branch
      %19 = sbr.rel (0) target = $region17
    $region16: #{neural_net_pairs_forward.1} parent=1 // pred_region
      _
    $region17: #{neural_net_pairs_forward.1} parent=1 // pred_fallthru
      _
    // Predicated region
    $region18: #{neural_net_pairs_forward.1} parent=1 // pred_check
      _
    $region19: #{neural_net_pairs_forward.1} parent=1 // pred_check_branch
      %21 = sbr.rel (0) target = $region21
    $region20: #{neural_net_pairs_forward.1} parent=1 // pred_region
      _
    $region21: #{neural_net_pairs_forward.1} parent=1 // pred_fallthru
      _
    %v22 = vld [vmem:[%s0] sm:$0xff]
    %v23 = vld [vmem:[%s0 + $0x8] sm:$0xff]
    %v24 = vld [vmem:[%s0 + $0x10] sm:$0xff]
    %v25 = vld [vmem:[%s0 + $0x18] sm:$0xff]
    %v26 = vld [vmem:[%s0 + $0x20] sm:$0xff]
    %v27 = vld [vmem:[%s0 + $0x28] sm:$0xff]
    %v28 = vld [vmem:[%s0 + $0x30] sm:$0xff]
    %v29 = vld [vmem:[%s0 + $0x38] sm:$0xff]
    %v30 = vld [vmem:[%s1] sm:$0xff]
    %v31 = vld [vmem:[%s1 + $0x8] sm:$0xff]
    %v32 = vld [vmem:[%s1 + $0x10] sm:$0xff]
    %v33 = vld [vmem:[%s1 + $0x18] sm:$0xff]
    %v34 = vld [vmem:[%s1 + $0x20] sm:$0xff]
    %v35 = vld [vmem:[%s1 + $0x28] sm:$0xff]
    %v36 = vld [vmem:[%s1 + $0x30] sm:$0xff]
    %v37 = vld [vmem:[%s1 + $0x38] sm:$0xff]
    %v38 = vld [vmem:[%s1 + $0x40] sm:$0xff]
    %v39 = vld [vmem:[%s1 + $0x48] sm:$0xff]
    %v40 = vld [vmem:[%s1 + $0x50] sm:$0xff]
    %v41 = vld [vmem:[%s1 + $0x58] sm:$0xff]
    %v42 = vld [vmem:[%s1 + $0x60] sm:$0xff]
    %v43 = vld [vmem:[%s1 + $0x68] sm:$0xff]
    %v44 = vld [vmem:[%s1 + $0x70] sm:$0xff]
    %v45 = vld [vmem:[%s1 + $0x78] sm:$0xff]
    %v46 = vld [vmem:[%s1 + $0x80] sm:$0xff]
    %v47 = vld [vmem:[%s1 + $0x88] sm:$0xff]
    %v48 = vld [vmem:[%s1 + $0x90] sm:$0xff]
    %v49 = vld [vmem:[%s1 + $0x98] sm:$0xff]
    %v50 = vld [vmem:[%s1 + $0xa0] sm:$0xff]
    %v51 = vld [vmem:[%s1 + $0xa8] sm:$0xff]
    %v52 = vld [vmem:[%s1 + $0xb0] sm:$0xff]
    %v53 = vld [vmem:[%s1 + $0xb8] sm:$0xff]
    %v54 = vld [vmem:[%s1 + $0xc0] sm:$0xff]
    %v55 = vld [vmem:[%s1 + $0xc8] sm:$0xff]
    %v56 = vld [vmem:[%s1 + $0xd0] sm:$0xff]
    %v57 = vld [vmem:[%s1 + $0xd8] sm:$0xff]
    %v58 = vld [vmem:[%s1 + $0xe0] sm:$0xff]
    %v59 = vld [vmem:[%s1 + $0xe8] sm:$0xff]
    %v60 = vld [vmem:[%s1 + $0xf0] sm:$0xff]
    %v61 = vld [vmem:[%s1 + $0xf8] sm:$0xff]
    %v62 = vld [vmem:[%s1 + $0x100] sm:$0xff]
    %v63 = vld [vmem:[%s1 + $0x108] sm:$0xff]
    %v64 = vld [vmem:[%s1 + $0x110] sm:$0xff]
    %v65 = vld [vmem:[%s1 + $0x118] sm:$0xff]
    %v66 = vld [vmem:[%s1 + $0x120] sm:$0xff]
    %v67 = vld [vmem:[%s1 + $0x128] sm:$0xff]
    %v68 = vld [vmem:[%s1 + $0x130] sm:$0xff]
    %v69 = vld [vmem:[%s1 + $0x138] sm:$0xff]
    %v70 = vld [vmem:[%s1 + $0x140] sm:$0xff]
    %v71 = vld [vmem:[%s1 + $0x148] sm:$0xff]
    %v72 = vld [vmem:[%s1 + $0x150] sm:$0xff]
    %v73 = vld [vmem:[%s1 + $0x158] sm:$0xff]
    %v74 = vld [vmem:[%s1 + $0x160] sm:$0xff]
    %v75 = vld [vmem:[%s1 + $0x168] sm:$0xff]
    %v76 = vld [vmem:[%s1 + $0x170] sm:$0xff]
    %v77 = vld [vmem:[%s1 + $0x178] sm:$0xff]
    %v78 = vld [vmem:[%s1 + $0x180] sm:$0xff]
    %v79 = vld [vmem:[%s1 + $0x188] sm:$0xff]
    %v80 = vld [vmem:[%s1 + $0x190] sm:$0xff]
    %v81 = vld [vmem:[%s1 + $0x198] sm:$0xff]
    %v82 = vld [vmem:[%s1 + $0x1a0] sm:$0xff]
    %v83 = vld [vmem:[%s1 + $0x1a8] sm:$0xff]
    %v84 = vld [vmem:[%s1 + $0x1b0] sm:$0xff]
    %v85 = vld [vmem:[%s1 + $0x1b8] sm:$0xff]
    %v86 = vld [vmem:[%s1 + $0x1c0] sm:$0xff]
    %v87 = vld [vmem:[%s1 + $0x1c8] sm:$0xff]
    %v88 = vld [vmem:[%s1 + $0x1d0] sm:$0xff]
    %v89 = vld [vmem:[%s1 + $0x1d8] sm:$0xff]
    %v90 = vld [vmem:[%s1 + $0x1e0] sm:$0xff]
    %v91 = vld [vmem:[%s1 + $0x1e8] sm:$0xff]
    %v92 = vld [vmem:[%s1 + $0x1f0] sm:$0xff]
    %v93 = vld [vmem:[%s1 + $0x1f8] sm:$0xff]
    %v94 = vld [vmem:[%s1 + $0x200] sm:$0xff]
    %v95 = vld [vmem:[%s1 + $0x208] sm:$0xff]
    %v96 = vld [vmem:[%s1 + $0x210] sm:$0xff]
    %v97 = vld [vmem:[%s1 + $0x218] sm:$0xff]
    %v98 = vld [vmem:[%s1 + $0x220] sm:$0xff]
    %v99 = vld [vmem:[%s1 + $0x228] sm:$0xff]
    %v100 = vld [vmem:[%s1 + $0x230] sm:$0xff]
    %v101 = vld [vmem:[%s1 + $0x238] sm:$0xff]
    %v102 = vld [vmem:[%s1 + $0x240] sm:$0xff]
    %v103 = vld [vmem:[%s1 + $0x248] sm:$0xff]
    %v104 = vld [vmem:[%s1 + $0x250] sm:$0xff]
    %v105 = vld [vmem:[%s1 + $0x258] sm:$0xff]
    %v106 = vld [vmem:[%s1 + $0x260] sm:$0xff]
    %v107 = vld [vmem:[%s1 + $0x268] sm:$0xff]
    %v108 = vld [vmem:[%s1 + $0x270] sm:$0xff]
    %v109 = vld [vmem:[%s1 + $0x278] sm:$0xff]
    %v110 = vld [vmem:[%s1 + $0x280] sm:$0xff]
    %v111 = vld [vmem:[%s1 + $0x288] sm:$0xff]
    %v112 = vld [vmem:[%s1 + $0x290] sm:$0xff]
    %v113 = vld [vmem:[%s1 + $0x298] sm:$0xff]
    %v114 = vld [vmem:[%s1 + $0x2a0] sm:$0xff]
    %v115 = vld [vmem:[%s1 + $0x2a8] sm:$0xff]
    %v116 = vld [vmem:[%s1 + $0x2b0] sm:$0xff]
    %v117 = vld [vmem:[%s1 + $0x2b8] sm:$0xff]
    %v118 = vld [vmem:[%s1 + $0x2c0] sm:$0xff]
    %v119 = vld [vmem:[%s1 + $0x2c8] sm:$0xff]
    %v120 = vld [vmem:[%s1 + $0x2d0] sm:$0xff]
    %v121 = vld [vmem:[%s1 + $0x2d8] sm:$0xff]
    %v122 = vld [vmem:[%s1 + $0x2e0] sm:$0xff]
    %v123 = vld [vmem:[%s1 + $0x2e8] sm:$0xff]
    %v124 = vld [vmem:[%s1 + $0x2f0] sm:$0xff]
    %v125 = vld [vmem:[%s1 + $0x2f8] sm:$0xff]
    %v126 = vld [vmem:[%s1 + $0x300] sm:$0xff]
    %v127 = vld [vmem:[%s1 + $0x308] sm:$0xff]
    %v128 = vld [vmem:[%s1 + $0x310] sm:$0xff]
    %v129 = vld [vmem:[%s1 + $0x318] sm:$0xff]
    %v130 = vld [vmem:[%s1 + $0x320] sm:$0xff]
    %v131 = vld [vmem:[%s1 + $0x328] sm:$0xff]
    %v132 = vld [vmem:[%s1 + $0x330] sm:$0xff]
    %v133 = vld [vmem:[%s1 + $0x338] sm:$0xff]
    %v134 = vld [vmem:[%s1 + $0x340] sm:$0xff]
    %v135 = vld [vmem:[%s1 + $0x348] sm:$0xff]
    %v136 = vld [vmem:[%s1 + $0x350] sm:$0xff]
    %v137 = vld [vmem:[%s1 + $0x358] sm:$0xff]
    %v138 = vld [vmem:[%s1 + $0x360] sm:$0xff]
    %v139 = vld [vmem:[%s1 + $0x368] sm:$0xff]
    %v140 = vld [vmem:[%s1 + $0x370] sm:$0xff]
    %v141 = vld [vmem:[%s1 + $0x378] sm:$0xff]
    %v142 = vld [vmem:[%s1 + $0x380] sm:$0xff]
    %v143 = vld [vmem:[%s1 + $0x388] sm:$0xff]
    %v144 = vld [vmem:[%s1 + $0x390] sm:$0xff]
    %v145 = vld [vmem:[%s1 + $0x398] sm:$0xff]
    %v146 = vld [vmem:[%s1 + $0x3a0] sm:$0xff]
    %v147 = vld [vmem:[%s1 + $0x3a8] sm:$0xff]
    %v148 = vld [vmem:[%s1 + $0x3b0] sm:$0xff]
    %v149 = vld [vmem:[%s1 + $0x3b8] sm:$0xff]
    %v150 = vld [vmem:[%s1 + $0x3c0] sm:$0xff]
    %v151 = vld [vmem:[%s1 + $0x3c8] sm:$0xff]
    %v152 = vld [vmem:[%s1 + $0x3d0] sm:$0x7]
    %v153 = vld [vmem:[%s2] sm:$0x1]
    %v155 = vlaneseq
    %v156 = vshrl.u32 %v155, 7
    %v157 = vsub.s32 0, %v156
    %v158 = vrot.slane %v153, %v157
    %v168 = vcombine.low %v22, %v26
    %v169 = vcombine.high %v22, %v26
    %v170 = vcombine.low %v23, %v27
    %v171 = vcombine.high %v23, %v27
    %v172 = vcombine.low %v24, %v28
    %v173 = vcombine.high %v24, %v28
    %v174 = vcombine.low %v25, %v29
    %v175 = vcombine.high %v25, %v29
    %vm183 = vcmask 678912
    %v184 = vsel %vm183, %v175, 0
    %vm186 = vcmask 1042432
    %v188 = vsel %vm186, %v152, 0
    %190 = vmatprep.subr.mxu0 0.0
    %191 = vmatpush1.msra.mxu0 %v30
    %192 = vmatprep.subr.mxu0 0.0
    %193 = vmatpush1.msra.mxu0 %v31
    %194 = vmatprep.subr.mxu0 0.0
    %195 = vmatpush1.msra.mxu0 %v32
    %196 = vmatprep.subr.mxu0 0.0
    %197 = vmatpush1.msra.mxu0 %v33
    %198 = vmatprep.subr.mxu0 0.0
    %199 = vmatpush1.msra.mxu0 %v34
    %200 = vmatprep.subr.mxu0 0.0
    %201 = vmatpush1.msra.mxu0 %v35
    %202 = vmatprep.subr.mxu0 0.0
    %203 = vmatpush1.msra.mxu0 %v36
    %204 = vmatprep.subr.mxu0 0.0
    %205 = vmatpush1.msra.mxu0 %v37
    %206 = vmatprep.subr.mxu0 0.0
    %207 = vmatpush1.msra.mxu0 %v38
    %208 = vmatprep.subr.mxu0 0.0
    %209 = vmatpush1.msra.mxu0 %v39
    %210 = vmatprep.subr.mxu0 0.0
    %211 = vmatpush1.msra.mxu0 %v40
    %212 = vmatprep.subr.mxu0 0.0
    %213 = vmatpush1.msra.mxu0 %v41
    %214 = vmatprep.subr.mxu0 0.0
    %215 = vmatpush1.msra.mxu0 %v42
    %216 = vmatprep.subr.mxu0 0.0
    %217 = vmatpush1.msra.mxu0 %v43
    %218 = vmatprep.subr.mxu0 0.0
    %219 = vmatpush1.msra.mxu0 %v44
    %220 = vmatprep.subr.mxu0 0.0
    %221 = vmatpush1.msra.mxu0 %v45
    %222 = vmatprep.subr.mxu0 0.0
    %223 = vmatpush1.msra.mxu0 %v46
    %224 = vmatprep.subr.mxu0 0.0
    %225 = vmatpush1.msra.mxu0 %v47
    %226 = vmatprep.subr.mxu0 0.0
    %227 = vmatpush1.msra.mxu0 %v48
    %228 = vmatprep.subr.mxu0 0.0
    %229 = vmatpush1.msra.mxu0 %v49
    %230 = vmatprep.subr.mxu0 0.0
    %231 = vmatpush1.msra.mxu0 %v50
    %232 = vmatprep.subr.mxu0 0.0
    %233 = vmatpush1.msra.mxu0 %v51
    %234 = vmatprep.subr.mxu0 0.0
    %235 = vmatpush1.msra.mxu0 %v52
    %236 = vmatprep.subr.mxu0 0.0
    %237 = vmatpush1.msra.mxu0 %v53
    %238 = vmatprep.subr.mxu0 0.0
    %239 = vmatpush1.msra.mxu0 %v54
    %240 = vmatprep.subr.mxu0 0.0
    %241 = vmatpush1.msra.mxu0 %v55
    %242 = vmatprep.subr.mxu0 0.0
    %243 = vmatpush1.msra.mxu0 %v56
    %244 = vmatprep.subr.mxu0 0.0
    %245 = vmatpush1.msra.mxu0 %v57
    %246 = vmatprep.subr.mxu0 0.0
    %247 = vmatpush1.msra.mxu0 %v58
    %248 = vmatprep.subr.mxu0 0.0
    %249 = vmatpush1.msra.mxu0 %v59
    %250 = vmatprep.subr.mxu0 0.0
    %251 = vmatpush1.msra.mxu0 %v60
    %252 = vmatprep.subr.mxu0 0.0
    %253 = vmatpush1.msra.mxu0 %v61
    %254 = vmatprep.mubr.f32.mxu0 %v169
    %255 = vmatmul.mubr.f32.gmra.mrb[0].mxu0 %v168
    %v256 = vpop.f32.mrb[0].mxu0
    %v257 = vadd.f32 %v158, %v256
    %v258 = vpop.f32.mrb[0].mxu0
    %259 = vdwg.mxu0
    %260 = vmatprep.subr.mxu0 0.0
    %261 = vmatpush1.msra.mxu0 %v62
    %262 = vmatprep.subr.mxu0 0.0
    %263 = vmatpush1.msra.mxu0 %v63
    %264 = vmatprep.subr.mxu0 0.0
    %265 = vmatpush1.msra.mxu0 %v64
    %266 = vmatprep.subr.mxu0 0.0
    %267 = vmatpush1.msra.mxu0 %v65
    %268 = vmatprep.subr.mxu0 0.0
    %269 = vmatpush1.msra.mxu0 %v66
    %270 = vmatprep.subr.mxu0 0.0
    %271 = vmatpush1.msra.mxu0 %v67
    %272 = vmatprep.subr.mxu0 0.0
    %273 = vmatpush1.msra.mxu0 %v68
    %274 = vmatprep.subr.mxu0 0.0
    %275 = vmatpush1.msra.mxu0 %v69
    %276 = vmatprep.subr.mxu0 0.0
    %277 = vmatpush1.msra.mxu0 %v70
    %278 = vmatprep.subr.mxu0 0.0
    %279 = vmatpush1.msra.mxu0 %v71
    %280 = vmatprep.subr.mxu0 0.0
    %281 = vmatpush1.msra.mxu0 %v72
    %282 = vmatprep.subr.mxu0 0.0
    %283 = vmatpush1.msra.mxu0 %v73
    %284 = vmatprep.subr.mxu0 0.0
    %285 = vmatpush1.msra.mxu0 %v74
    %286 = vmatprep.subr.mxu0 0.0
    %287 = vmatpush1.msra.mxu0 %v75
    %288 = vmatprep.subr.mxu0 0.0
    %289 = vmatpush1.msra.mxu0 %v76
    %290 = vmatprep.subr.mxu0 0.0
    %291 = vmatpush1.msra.mxu0 %v77
    %292 = vmatprep.subr.mxu0 0.0
    %293 = vmatpush1.msra.mxu0 %v78
    %294 = vmatprep.subr.mxu0 0.0
    %295 = vmatpush1.msra.mxu0 %v79
    %296 = vmatprep.subr.mxu0 0.0
    %297 = vmatpush1.msra.mxu0 %v80
    %298 = vmatprep.subr.mxu0 0.0
    %299 = vmatpush1.msra.mxu0 %v81
    %300 = vmatprep.subr.mxu0 0.0
    %301 = vmatpush1.msra.mxu0 %v82
    %302 = vmatprep.subr.mxu0 0.0
    %303 = vmatpush1.msra.mxu0 %v83
    %304 = vmatprep.subr.mxu0 0.0
    %305 = vmatpush1.msra.mxu0 %v84
    %306 = vmatprep.subr.mxu0 0.0
    %307 = vmatpush1.msra.mxu0 %v85
    %308 = vmatprep.subr.mxu0 0.0
    %309 = vmatpush1.msra.mxu0 %v86
    %310 = vmatprep.subr.mxu0 0.0
    %311 = vmatpush1.msra.mxu0 %v87
    %312 = vmatprep.subr.mxu0 0.0
    %313 = vmatpush1.msra.mxu0 %v88
    %314 = vmatprep.subr.mxu0 0.0
    %315 = vmatpush1.msra.mxu0 %v89
    %316 = vmatprep.subr.mxu0 0.0
    %317 = vmatpush1.msra.mxu0 %v90
    %318 = vmatprep.subr.mxu0 0.0
    %319 = vmatpush1.msra.mxu0 %v91
    %320 = vmatprep.subr.mxu0 0.0
    %321 = vmatpush1.msra.mxu0 %v92
    %322 = vmatprep.subr.mxu0 0.0
    %323 = vmatpush1.msra.mxu0 %v93
    %324 = vmatprep.mubr.f32.mxu0 %v171
    %325 = vmatmul.mubr.f32.gmra.mrb[0].mxu0 %v170
    %v326 = vpop.f32.mrb[0].mxu0
    %v327 = vadd.f32 %v257, %v326
    %v328 = vpop.f32.mrb[0].mxu0
    %329 = vdwg.mxu0
    %330 = vmatprep.subr.mxu0 0.0
    %331 = vmatpush1.msra.mxu0 %v94
    %332 = vmatprep.subr.mxu0 0.0
    %333 = vmatpush1.msra.mxu0 %v95
    %334 = vmatprep.subr.mxu0 0.0
    %335 = vmatpush1.msra.mxu0 %v96
    %336 = vmatprep.subr.mxu0 0.0
    %337 = vmatpush1.msra.mxu0 %v97
    %338 = vmatprep.subr.mxu0 0.0
    %339 = vmatpush1.msra.mxu0 %v98
    %340 = vmatprep.subr.mxu0 0.0
    %341 = vmatpush1.msra.mxu0 %v99
    %342 = vmatprep.subr.mxu0 0.0
    %343 = vmatpush1.msra.mxu0 %v100
    %344 = vmatprep.subr.mxu0 0.0
    %345 = vmatpush1.msra.mxu0 %v101
    %346 = vmatprep.subr.mxu0 0.0
    %347 = vmatpush1.msra.mxu0 %v102
    %348 = vmatprep.subr.mxu0 0.0
    %349 = vmatpush1.msra.mxu0 %v103
    %350 = vmatprep.subr.mxu0 0.0
    %351 = vmatpush1.msra.mxu0 %v104
    %352 = vmatprep.subr.mxu0 0.0
    %353 = vmatpush1.msra.mxu0 %v105
    %354 = vmatprep.subr.mxu0 0.0
    %355 = vmatpush1.msra.mxu0 %v106
    %356 = vmatprep.subr.mxu0 0.0
    %357 = vmatpush1.msra.mxu0 %v107
    %358 = vmatprep.subr.mxu0 0.0
    %359 = vmatpush1.msra.mxu0 %v108
    %360 = vmatprep.subr.mxu0 0.0
    %361 = vmatpush1.msra.mxu0 %v109
    %362 = vmatprep.subr.mxu0 0.0
    %363 = vmatpush1.msra.mxu0 %v110
    %364 = vmatprep.subr.mxu0 0.0
    %365 = vmatpush1.msra.mxu0 %v111
    %366 = vmatprep.subr.mxu0 0.0
    %367 = vmatpush1.msra.mxu0 %v112
    %368 = vmatprep.subr.mxu0 0.0
    %369 = vmatpush1.msra.mxu0 %v113
    %370 = vmatprep.subr.mxu0 0.0
    %371 = vmatpush1.msra.mxu0 %v114
    %372 = vmatprep.subr.mxu0 0.0
    %373 = vmatpush1.msra.mxu0 %v115
    %374 = vmatprep.subr.mxu0 0.0
    %375 = vmatpush1.msra.mxu0 %v116
    %376 = vmatprep.subr.mxu0 0.0
    %377 = vmatpush1.msra.mxu0 %v117
    %378 = vmatprep.subr.mxu0 0.0
    %379 = vmatpush1.msra.mxu0 %v118
    %380 = vmatprep.subr.mxu0 0.0
    %381 = vmatpush1.msra.mxu0 %v119
    %382 = vmatprep.subr.mxu0 0.0
    %383 = vmatpush1.msra.mxu0 %v120
    %384 = vmatprep.subr.mxu0 0.0
    %385 = vmatpush1.msra.mxu0 %v121
    %386 = vmatprep.subr.mxu0 0.0
    %387 = vmatpush1.msra.mxu0 %v122
    %388 = vmatprep.subr.mxu0 0.0
    %389 = vmatpush1.msra.mxu0 %v123
    %390 = vmatprep.subr.mxu0 0.0
    %391 = vmatpush1.msra.mxu0 %v124
    %392 = vmatprep.subr.mxu0 0.0
    %393 = vmatpush1.msra.mxu0 %v125
    %394 = vmatprep.mubr.f32.mxu0 %v173
    %395 = vmatmul.mubr.f32.gmra.mrb[0].mxu0 %v172
    %v396 = vpop.f32.mrb[0].mxu0
    %v397 = vadd.f32 %v327, %v396
    %v398 = vpop.f32.mrb[0].mxu0
    %399 = vdwg.mxu0
    %400 = vmatprep.subr.mxu0 0.0
    %401 = vmatpush1.msra.mxu0 %v126
    %402 = vmatprep.subr.mxu0 0.0
    %403 = vmatpush1.msra.mxu0 %v127
    %404 = vmatprep.subr.mxu0 0.0
    %405 = vmatpush1.msra.mxu0 %v128
    %406 = vmatprep.subr.mxu0 0.0
    %407 = vmatpush1.msra.mxu0 %v129
    %408 = vmatprep.subr.mxu0 0.0
    %409 = vmatpush1.msra.mxu0 %v130
    %410 = vmatprep.subr.mxu0 0.0
    %411 = vmatpush1.msra.mxu0 %v131
    %412 = vmatprep.subr.mxu0 0.0
    %413 = vmatpush1.msra.mxu0 %v132
    %414 = vmatprep.subr.mxu0 0.0
    %415 = vmatpush1.msra.mxu0 %v133
    %416 = vmatprep.subr.mxu0 0.0
    %417 = vmatpush1.msra.mxu0 %v134
    %418 = vmatprep.subr.mxu0 0.0
    %419 = vmatpush1.msra.mxu0 %v135
    %420 = vmatprep.subr.mxu0 0.0
    %421 = vmatpush1.msra.mxu0 %v136
    %422 = vmatprep.subr.mxu0 0.0
    %423 = vmatpush1.msra.mxu0 %v137
    %424 = vmatprep.subr.mxu0 0.0
    %425 = vmatpush1.msra.mxu0 %v138
    %426 = vmatprep.subr.mxu0 0.0
    %427 = vmatpush1.msra.mxu0 %v139
    %428 = vmatprep.subr.mxu0 0.0
    %429 = vmatpush1.msra.mxu0 %v140
    %430 = vmatprep.subr.mxu0 0.0
    %431 = vmatpush1.msra.mxu0 %v141
    %432 = vmatprep.subr.mxu0 0.0
    %433 = vmatpush1.msra.mxu0 %v142
    %434 = vmatprep.subr.mxu0 0.0
    %435 = vmatpush1.msra.mxu0 %v143
    %436 = vmatprep.subr.mxu0 0.0
    %437 = vmatpush1.msra.mxu0 %v144
    %438 = vmatprep.subr.mxu0 0.0
    %439 = vmatpush1.msra.mxu0 %v145
    %440 = vmatprep.subr.mxu0 0.0
    %441 = vmatpush1.msra.mxu0 %v146
    %442 = vmatprep.subr.mxu0 0.0
    %443 = vmatpush1.msra.mxu0 %v147
    %444 = vmatprep.subr.mxu0 0.0
    %445 = vmatpush1.msra.mxu0 %v148
    %446 = vmatprep.subr.mxu0 0.0
    %447 = vmatpush1.msra.mxu0 %v149
    %448 = vmatprep.subr.mxu0 0.0
    %449 = vmatpush1.msra.mxu0 %v150
    %450 = vmatprep.subr.mxu0 0.0
    %451 = vmatpush1.msra.mxu0 %v151
    %452 = vmatprep.subr.mxu0 0.0
    %453 = vmatpush1.msra.mxu0 %v188
    %454 = vmatprep.subr.mxu0 0.0
    %455 = vmatpush1.msra.mxu0 0.0
    %456 = vmatprep.subr.mxu0 0.0
    %457 = vmatpush1.msra.mxu0 0.0
    %458 = vmatprep.subr.mxu0 0.0
    %459 = vmatpush1.msra.mxu0 0.0
    %460 = vmatprep.subr.mxu0 0.0
    %461 = vmatpush1.msra.mxu0 0.0
    %462 = vmatprep.subr.mxu0 0.0
    %463 = vmatpush1.msra.mxu0 0.0
    %464 = vmatprep.mubr.f32.mxu0 %v184
    %465 = vmatmul.mubr.f32.gmra.mrb[0].mxu0 %v174
    %v466 = vpop.f32.mrb[0].mxu0
    %v467 = vadd.f32 %v397, %v466
    %v468 = vpop.f32.mrb[0].mxu0
    %469 = vdwg.mxu0
    %v470 = vmax.f32 %v467, 0.0
    %v471 = vld [vmem:[%s3] sm:$0x1]
    %v473 = vlaneseq
    %v474 = vshrl.u32 %v473, 7
    %v475 = vsub.s32 0, %v474
    %v476 = vrot.slane %v471, %v475
    %v478 = vmul.f32 %v470, %v476
    %vm479 = vcmask 523264
    %v480 = vsel %vm479, %v478, 0.0
    %481 = vadd.xlane.f32.xlu0 %v480
    %v482 = vpop.xlane.xlu0 %481
    %v483 = vld [vmem:[#allocation2] sm:$0x1]
    %v485 = vlaneseq
    %v486 = vshrl.u32 %v485, 7
    %v487 = vsub.s32 0, %v486
    %v488 = vrot.slane %v483, %v487
    %v490 = vadd.f32 %v482, %v488
    %v491 = vxor.u32 %v490, 2147483648
    %v492 = vmul.f32 %v491, 1.442695
    %v493 = vpow.pop %v492
    %v494 = vadd.f32 %v493, 1.0
    %v495 = vrcp.pop %v494
    %v496 = vmul.f32 1.0, %v495
    %vm497 = vcmask 7168
    %498 = vst.msk [vmem:[#allocation3] sm:$0xff] %vm497, %v496
    // Predicated region
    $region22: #{neural_net_pairs_forward.1} parent=1 // pred_check
      _
    $region23: #{neural_net_pairs_forward.1} parent=1 // pred_check_branch
      %500 = sbr.rel (0) target = $region25
    $region24: #{neural_net_pairs_forward.1} parent=1 // pred_region
      // Predicated region
      $region26: #{neural_net_pairs_forward.1} parent=24 // pred_check
        _
      $region27: #{neural_net_pairs_forward.1} parent=24 // pred_check_branch
        %502 = sbr.rel (0) target = $region29
      $region28: #{neural_net_pairs_forward.1} parent=24 // pred_region
        // Predicated region
        $region30: #{neural_net_pairs_forward.1} parent=28 // pred_check
          _
        $region31: #{neural_net_pairs_forward.1} parent=28 // pred_check_branch
          %504 = sbr.rel target = $region33
        $region32: #{neural_net_pairs_forward.1} parent=28 // pred_region
          // Predicated region
          $region45: #{neural_net_pairs_forward.1} parent=32 // pred_check
            _
          $region46: #{neural_net_pairs_forward.1} parent=32 // pred_check_branch
            %519 = sbr.rel (0) target = $region48
          $region47: #{neural_net_pairs_forward.1} parent=32 // pred_region
            loop: start=0, step=1, limit=1
            $region49: #{neural_net_pairs_forward.1} parent=47 // loop_pre_header
              _
            $region50: #{neural_net_pairs_forward.1} parent=47 // loop_header
              %s522 = sphi 0, %s526
              %p523 = scmp.ge.s32.totalorder %s522, 1
              %s527 = sphi [#allocation3], [#allocation3]
              %s528 = sphi %s5, %s5
            $region51: #{neural_net_pairs_forward.1} parent=47 // loop_header_branch
              %525 = sbr.rel (%p523) target = $region55
            $region52: #{neural_net_pairs_forward.1} parent=47 // loop_body
              %v529 = vld [vmem:[%s527] sm:$0xf]
              %530 = vst [vmem:[%s528] sm:$0xf] %v529
            $region53: #{neural_net_pairs_forward.1} parent=47 // loop_footer
              %s526 = sadd.s32 1, %s522
            $region54: #{neural_net_pairs_forward.1} parent=47 // loop_footer_branch
              %521 = sbr.rel target = $region50
            $region55: #{neural_net_pairs_forward.1} parent=47 // loop_exit
              _
          $region48: #{neural_net_pairs_forward.1} parent=32 // pred_fallthru
            _
        $region33: #{neural_net_pairs_forward.1} parent=28 // pred_fallthru
          _
        // Predicated region
        $region34: #{neural_net_pairs_forward.1} parent=28 // pred_check
          _
        $region35: #{neural_net_pairs_forward.1} parent=28 // pred_check_branch
          %506 = sbr.rel (0) target = $region37
        $region36: #{neural_net_pairs_forward.1} parent=28 // pred_region
          loop: start=0, step=1, limit=1
          $region38: #{neural_net_pairs_forward.1} parent=36 // loop_pre_header
            _
          $region39: #{neural_net_pairs_forward.1} parent=36 // loop_header
            %s509 = sphi 0, %s513
            %p510 = scmp.ge.s32.totalorder %s509, 1
            %s514 = sphi [#allocation3], [#allocation3]
            %s515 = sphi %s5, %s5
          $region40: #{neural_net_pairs_forward.1} parent=36 // loop_header_branch
            %512 = sbr.rel (%p510) target = $region44
          $region41: #{neural_net_pairs_forward.1} parent=36 // loop_body
            %v516 = vld [vmem:[%s514] sm:$0xf]
            %517 = vst [vmem:[%s515] sm:$0xf] %v516
          $region42: #{neural_net_pairs_forward.1} parent=36 // loop_footer
            %s513 = sadd.s32 1, %s509
          $region43: #{neural_net_pairs_forward.1} parent=36 // loop_footer_branch
            %508 = sbr.rel target = $region39
          $region44: #{neural_net_pairs_forward.1} parent=36 // loop_exit
            _
        $region37: #{neural_net_pairs_forward.1} parent=28 // pred_fallthru
          _
      $region29: #{neural_net_pairs_forward.1} parent=24 // pred_fallthru
        _
      %531 = vnop
    $region25: #{neural_net_pairs_forward.1} parent=1 // pred_fallthru
      _
    // Predicated region
    $region56: #{neural_net_pairs_forward.1} parent=1 // pred_check
      _
    $region57: #{neural_net_pairs_forward.1} parent=1 // pred_check_branch
      %533 = sbr.rel (0) target = $region59
    $region58: #{neural_net_pairs_forward.1} parent=1 // pred_region
      _
    $region59: #{neural_net_pairs_forward.1} parent=1 // pred_fallthru
      _

</llo_original>
